<compile_context>
chip_gen: v6e
topology: v6e:2x2x1
jax: 0.10.0
libtpu: 0.0.40
codegen_flags: <defaults>
</compile_context>

<pallas_src>
import functools

import jax
import jax.numpy as jnp
from jax.experimental import pallas as pl
from jax.experimental.pallas import tpu as pltpu

_LANE = 128
_SUBLANE = 8


def _edge_update_kernel(theta_ref, v_ref, a_ref, s_ref):
    theta = theta_ref[0]                      # SMEM scalar
    v = v_ref[...]                            # (rows, 128) f32, vattr_i[:, 0]
    a = a_ref[...]                            # (rows, 128) f32, edge_attr[:, 0]
    # S_ij = relu(-A_ij / v_i - theta); exact divide for parity with PyTorch.
    s_ref[...] = jnp.maximum(-a / v - theta, 0.0)


@functools.partial(jax.jit, static_argnames=("edge_tile",))
def edge_update(vattr_i, edge_attr, theta, *, edge_tile=131072):
    """Pallas implementation of EdgeUpdate.forward.

    vattr_i:   (E, Fv) float — node attributes gathered onto edge sources
    edge_attr: (E, Fe) float — edge attributes
    theta:     scalar (runtime value, no recompile)
    returns:   (E, 2) float32 — [A_ij, relu(-A_ij / v_i - theta)]
    """
    E = vattr_i.shape[0]
    if E == 0:
        return jnp.zeros((0, 2), jnp.float32)

    # Lane-dense 1-D views of the single column each side actually uses.
    v = vattr_i[:, 0].astype(jnp.float32)
    a = edge_attr[:, 0].astype(jnp.float32)

    # Pad only to the next lane multiple (tiny tail; fuses with the slice
    # under jit), then fold to a lane-dense (rows, 128) layout.
    pad = (-E) % _LANE
    v_p = jnp.pad(v, (0, pad), constant_values=1.0) if pad else v
    a_p = jnp.pad(a, (0, pad)) if pad else a
    rows = (E + pad) // _LANE
    v2 = v_p.reshape(rows, _LANE)
    a2 = a_p.reshape(rows, _LANE)

    # Tile sizing: rows per grid step, multiple of the 8-sublane granule,
    # clamped to the (sublane-rounded) problem size.  Ragged last block is
    # handled by Pallas (grid = cdiv), no full-tile padding needed.
    rows_per_tile = max(_SUBLANE, (edge_tile // _LANE) // _SUBLANE * _SUBLANE)
    rows_ceil = ((rows + _SUBLANE - 1) // _SUBLANE) * _SUBLANE
    rows_per_tile = min(rows_per_tile, rows_ceil)
    n_tiles = pl.cdiv(rows, rows_per_tile)

    theta_arr = jnp.asarray(theta, jnp.float32).reshape(1)

    s2 = pl.pallas_call(
        _edge_update_kernel,
        out_shape=jax.ShapeDtypeStruct((rows, _LANE), jnp.float32),
        grid_spec=pl.GridSpec(
            grid=(n_tiles,),
            in_specs=[
                pl.BlockSpec(memory_space=pltpu.MemorySpace.SMEM),       # theta
                pl.BlockSpec((rows_per_tile, _LANE), lambda i: (i, 0)),  # v
                pl.BlockSpec((rows_per_tile, _LANE), lambda i: (i, 0)),  # A
            ],
            out_specs=pl.BlockSpec((rows_per_tile, _LANE), lambda i: (i, 0)),
        ),
        compiler_params=pltpu.CompilerParams(
            dimension_semantics=("parallel",),
        ),
    )(theta_arr, v2, a2)

    # Layout plumbing back to the reference result: cat([A, S], dim=1).
    # Column 0 reuses the pre-pad `a` slice (no kernel passthrough needed);
    # trim + stack fuse into a single pass under jit.
    s = s2.reshape(-1)[:E]
    return jnp.stack([a, s], axis=1)


if __name__ == "__main__":
    key = jax.random.PRNGKey(0)
    k1, k2 = jax.random.split(key, 2)

    # E deliberately NOT a multiple of 128 to exercise the tail pad; the
    # second call uses a small tile so the grid has a ragged last block.
    E, Fv, Fe = 3000, 4, 3
    theta = 0.1

    # v_i is a divisor; keep it positive and away from 0 (same as PyTorch use).
    vattr_i = jax.random.uniform(k1, (E, Fv), jnp.float32, minval=0.5, maxval=2.0)
    edge_attr = jax.random.normal(k2, (E, Fe), jnp.float32)

    # unused by the forward pass, kept only for signature parity with PyTorch
    vattr_j = vattr_i
    g = jnp.zeros((E, 1), jnp.float32)
    batch = jnp.zeros((E,), jnp.int32)

    # plain-JAX reference
    v_i = vattr_i[:, 0:1]
    A_ij = edge_attr[:, 0:1]
    ref = jnp.concatenate(
        [A_ij, jnp.maximum(-A_ij / v_i - theta, 0.0)], axis=1
    )

    # 1) default large tile (clamped to the small problem -> single step)
    out = jax.block_until_ready(edge_update(vattr_i, edge_attr, theta))
    assert out.shape == (E, 2)
    assert jnp.allclose(out, ref, atol=1e-6, rtol=1e-5), float(
        jnp.max(jnp.abs(out - ref))
    )

    # 2) small tile -> multi-step grid with a ragged (masked) last block
    out2 = jax.block_until_ready(
        edge_update(vattr_i, edge_attr, theta, edge_tile=2048)
    )
    assert jnp.allclose(out2, ref, atol=1e-6, rtol=1e-5), float(
        jnp.max(jnp.abs(out2 - ref))
    )

    print("KERNEL_OK")
</pallas_src>

<mosaic_0001>
module attributes {stable_mosaic.version = 11 : i64} {
  func.func @_edge_update_kernel(%arg0: i32, %arg1: memref<1xf32, #tpu.memory_space<smem>>, %arg2: memref<24x128xf32, #tpu.memory_space<vmem>>, %arg3: memref<24x128xf32, #tpu.memory_space<vmem>>, %arg4: memref<24x128xf32, #tpu.memory_space<vmem>>) attributes {dimension_semantics = [#tpu.dimension_semantics<parallel>], iteration_bounds = array<i64: 1>, scalar_prefetch = 0 : i64, scratch_operands = 0 : i64, tpu.core_type = #tpu.core_type<tc>, window_params = [{transform_indices = @transform_0, window_bounds = array<i64: 1>}, {transform_indices = @transform_1, window_bounds = array<i64: 24, 128>}, {transform_indices = @transform_2, window_bounds = array<i64: 24, 128>}, {transform_indices = @transform_3, window_bounds = array<i64: 24, 128>}]} {
    %c0 = arith.constant 0 : index
    %0 = memref.load %arg1[%c0] : memref<1xf32, #tpu.memory_space<smem>>
    %c0_0 = arith.constant 0 : index
    %c0_1 = arith.constant 0 : index
    %1 = vector.load %arg2[%c0_0, %c0_1] : memref<24x128xf32, #tpu.memory_space<vmem>>, vector<24x128xf32>
    %c0_2 = arith.constant 0 : index
    %c0_3 = arith.constant 0 : index
    %2 = vector.load %arg3[%c0_2, %c0_3] : memref<24x128xf32, #tpu.memory_space<vmem>>, vector<24x128xf32>
    %cst = arith.constant 0.000000e+00 : f32
    %3 = vector.broadcast %cst : f32 to vector<24x128xf32>
    %4 = arith.subf %3, %2 : vector<24x128xf32>
    %5 = arith.divf %4, %1 : vector<24x128xf32>
    %6 = vector.broadcast %0 : f32 to vector<24x128xf32>
    %7 = arith.subf %5, %6 : vector<24x128xf32>
    %cst_4 = arith.constant 0.000000e+00 : f32
    %8 = vector.broadcast %cst_4 : f32 to vector<24x128xf32>
    %9 = arith.maximumf %7, %8 : vector<24x128xf32>
    %c0_5 = arith.constant 0 : index
    %c0_6 = arith.constant 0 : index
    %10 = vector.load %arg4[%c0_5, %c0_6] : memref<24x128xf32, #tpu.memory_space<vmem>>, vector<24x128xf32>
    tpu.vector_store %arg4[%c0_5, %c0_6], %9 {strides = array<i32>} : memref<24x128xf32, #tpu.memory_space<vmem>>, vector<24x128xf32>,
    return
  }
  func.func @transform_0(%arg0: i32) -> i32 {
    %c0_i32 = arith.constant 0 : i32
    %c0_i32_0 = arith.constant 0 : i32
    return %c0_i32 : i32
  }
  func.func @transform_1(%arg0: i32) -> (i32, i32) {
    %c0_i32 = arith.constant 0 : i32
    %c0_i32_0 = arith.constant 0 : i32
    return %arg0, %c0_i32 : i32, i32
  }
  func.func @transform_2(%arg0: i32) -> (i32, i32) {
    %c0_i32 = arith.constant 0 : i32
    %c0_i32_0 = arith.constant 0 : i32
    return %arg0, %c0_i32 : i32, i32
  }
  func.func @transform_3(%arg0: i32) -> (i32, i32) {
    %c0_i32 = arith.constant 0 : i32
    %c0_i32_0 = arith.constant 0 : i32
    return %arg0, %c0_i32 : i32, i32
  }
}

</mosaic_0001>

<llo_original>
// kernel: edge_update.1
$region0: #{edge_update.1}
  #allocation0 [shape = 'u32[]', space=smem, size = 0x4, offset = 0x4, fixed_abs, tag = 'smem constant byte address 0x4 - core index']
  #allocation1 [shape = 'u32[144,128]{1,0:T(1,128)}', space=vmem, size = 0x12000, scoped, tag = 'internal scratch']
  #allocation2 [shape = 'f32[1]{0:T(128)S(6)}', space=smem, size = 0x200, scoped, tag = 'scoped memory for edge_update.1']
  %s0 = inlined_call_operand.<no memory space> [shape: f32[1], index: 0, kind: input, shape index: {}]
  %s1 = inlined_call_operand.vmem [shape: f32[24,128], index: 1, kind: input, shape index: {}]
  %s2 = inlined_call_operand.vmem [shape: f32[24,128], index: 2, kind: input, shape index: {}]
  %s3 = inlined_call_operand.vmem [shape: f32[24,128], index: 3, kind: output, shape index: {}]
  %s4 = sld [smem:[#allocation0]]
  $region22: #{edge_update.1} parent=0
    _
  %s6 = ssub.s32 1, %s4
  %s7 = scalar_select 0, %s6, %s4
  %8 = sst [smem:[#allocation2]] %s0
  // Predicated region
  $region2: #{edge_update.1} parent=0 // pred_check
    _
  $region3: #{edge_update.1} parent=0 // pred_check_branch
    %10 = sbr.rel (0) target = $region5
  $region4: #{edge_update.1} parent=0 // pred_region
    _
  $region5: #{edge_update.1} parent=0 // pred_fallthru
    _
  // Predicated region
  $region6: #{edge_update.1} parent=0 // pred_check
    _
  $region7: #{edge_update.1} parent=0 // pred_check_branch
    %12 = sbr.rel (0) target = $region9
  $region8: #{edge_update.1} parent=0 // pred_region
    _
  $region9: #{edge_update.1} parent=0 // pred_fallthru
    _
  // Predicated region
  $region10: #{edge_update.1} parent=0 // pred_check
    _
  $region11: #{edge_update.1} parent=0 // pred_check_branch
    %14 = sbr.rel (0) target = $region13
  $region12: #{edge_update.1} parent=0 // pred_region
    _
  $region13: #{edge_update.1} parent=0 // pred_fallthru
    _
  %s15 = sld [smem:[#allocation2]]
  %v16 = vld [vmem:[%s1] sm:$0xff]
  %v17 = vld [vmem:[%s1 + $0x8] sm:$0xff]
  %v18 = vld [vmem:[%s1 + $0x10] sm:$0xff]
  %v19 = vld [vmem:[%s2] sm:$0xff]
  %v20 = vld [vmem:[%s2 + $0x8] sm:$0xff]
  %v21 = vld [vmem:[%s2 + $0x10] sm:$0xff]
  %v22 = vsub.f32 0.0, %v19
  %v23 = vsub.f32 0.0, %v20
  %v24 = vsub.f32 0.0, %v21
  %v25 = vrcp.pop %v16
  %v26 = vmul.f32 %v22, %v25
  %v27 = vrcp.pop %v17
  %v28 = vmul.f32 %v23, %v27
  %v29 = vrcp.pop %v18
  %v30 = vmul.f32 %v24, %v29
  %v31 = vstv %s15
  %v32 = vsub.f32 %v26, %v31
  %v33 = vsub.f32 %v28, %v31
  %v34 = vsub.f32 %v30, %v31
  %v35 = vmax.f32 %v32, 0.0
  %v36 = vmax.f32 %v33, 0.0
  %v37 = vmax.f32 %v34, 0.0
  %38 = vst [vmem:[%s3] sm:$0xff] %v35
  %39 = vst [vmem:[%s3 + $0x8] sm:$0xff] %v36
  %40 = vst [vmem:[%s3 + $0x10] sm:$0xff] %v37
  // Predicated region
  $region14: #{edge_update.1} parent=0 // pred_check
    _
  $region15: #{edge_update.1} parent=0 // pred_check_branch
    %42 = sbr.rel (0) target = $region17
  $region16: #{edge_update.1} parent=0 // pred_region
    _
  $region17: #{edge_update.1} parent=0 // pred_fallthru
    _
  // Predicated region
  $region18: #{edge_update.1} parent=0 // pred_check
    _
  $region19: #{edge_update.1} parent=0 // pred_check_branch
    %44 = sbr.rel (0) target = $region21
  $region20: #{edge_update.1} parent=0 // pred_region
    _
  $region21: #{edge_update.1} parent=0 // pred_fallthru
    _

</llo_original>
